<compile_context>
chip_gen: v6e
topology: v6e:2x2x1
jax: 0.10.0
libtpu: 0.0.40
codegen_flags: <defaults>
</compile_context>

<pallas_src>
import jax
import jax.numpy as jnp
from jax.experimental import pallas as pl
from jax.experimental.pallas import tpu as pltpu


def _round_up(x, m):
    return (x + m - 1) // m * m


def _pred_kernel(x_ref, w1_ref, b1_ref, w2_ref, b2_ref, msig_ref, mhalf_ref,
                 o_ref):
    """One (batch, spatial-tile) grid step.

    x_ref : (1, Cin, T)        input tile: channels on sublanes, pixels on lanes
    w1_ref: (Chid, Cin)        first 1x1 conv weight   (VMEM-resident)
    b1_ref: (Chid, 1)
    w2_ref: (Cout_pad, Chid)   second 1x1 conv weight  (zero-padded rows)
    b2_ref: (Cout_pad, 1)
    msig_ref / mhalf_ref: (Cout_pad, 1) f32 {0,1} masks for the channel-wise
        sigmoid / sigmoid-0.5 post-processing.
    o_ref : (1, Cout_pad, T)   output tile, already in NCHW layout.
    """
    x = x_ref[0]                                            # (Cin, T)
    h = jnp.dot(w1_ref[...], x, preferred_element_type=jnp.float32)
    h = h + b1_ref[...]                                     # (Chid, T), f32
    # nn.Dropout(p=0.3) is identity in eval mode.
    # TODO(synk): train-mode dropout (stochastic masking via pltpu.prng_*) not implemented.
    h = jnp.where(h > 0, h, 0.01 * h)                       # LeakyReLU(0.01)
    y = jnp.dot(w2_ref[...], h.astype(w2_ref.dtype),
                preferred_element_type=jnp.float32)
    y = y + b2_ref[...]                                     # (Cout_pad, T), f32

    # Channel-wise post-processing (the in-place sigmoid edits in PyTorch):
    #   anchor channel c < 5A with c%5 == 0      -> sigmoid(y)
    #   anchor channel c < 5A with c%5 in {1,2}  -> sigmoid(y) - 0.5
    sig = jax.nn.sigmoid(y)
    msig = jnp.broadcast_to(msig_ref[...], y.shape) > 0.0
    mhalf = jnp.broadcast_to(mhalf_ref[...], y.shape) > 0.0
    y = jnp.where(msig, sig, jnp.where(mhalf, sig - 0.5, y))
    o_ref[0] = y


def _run_pred_layer(features, w1, b1, w2, b2, num_anchors, num_classes,
                    compute_dtype=jnp.float32, tile_hw=512):
    """features: (B, Cin, H, W) NCHW.

    Returns (B, Cout_pad, HWp) f32; the first 5A+C channels and first H*W
    spatial positions are valid (rest is padding).
    """
    B, Cin, H, W = features.shape
    Chid = w1.shape[0]
    Cout = 5 * num_anchors + num_classes
    hw = H * W

    LANE = 128
    tile = min(tile_hw, _round_up(hw, LANE))     # lane-dense spatial tile
    hwp = _round_up(hw, tile)                    # padded spatial extent
    cout_pad = _round_up(Cout, 8)                # sublane-aligned output channels

    # NCHW view with spatial flattened (free); pad spatial up to the tile so
    # every DMA / store is rectangular and aligned (no ragged last tile).
    x = features.reshape(B, Cin, hw)
    if hwp != hw:
        x = jnp.pad(x, ((0, 0), (0, 0), (0, hwp - hw)))
    x = x.astype(compute_dtype)

    w1c = w1.astype(compute_dtype)                                    # (Chid, Cin)
    w2c = jnp.pad(w2, ((0, cout_pad - Cout), (0, 0))).astype(compute_dtype)
    b1c = b1.reshape(Chid, 1).astype(jnp.float32)
    b2c = jnp.pad(b2, (0, cout_pad - Cout)).reshape(cout_pad, 1).astype(jnp.float32)

    # Precomputed channel masks (tiny, VMEM-resident across all grid steps).
    ch = jnp.arange(cout_pad)
    is_anchor = ch < 5 * num_anchors
    r = ch % 5
    m_sig = (is_anchor & (r == 0)).astype(jnp.float32)[:, None]          # (Cout_pad, 1)
    m_half = (is_anchor & ((r == 1) | (r == 2))).astype(jnp.float32)[:, None]

    grid = (B, hwp // tile)
    const = lambda b, t: (0, 0)
    out = pl.pallas_call(
        _pred_kernel,
        out_shape=jax.ShapeDtypeStruct((B, cout_pad, hwp), jnp.float32),
        grid=grid,
        in_specs=[
            pl.BlockSpec((1, Cin, tile), lambda b, t: (b, 0, t)),
            pl.BlockSpec((Chid, Cin), const),
            pl.BlockSpec((Chid, 1), const),
            pl.BlockSpec((cout_pad, Chid), const),
            pl.BlockSpec((cout_pad, 1), const),
            pl.BlockSpec((cout_pad, 1), const),
            pl.BlockSpec((cout_pad, 1), const),
        ],
        out_specs=pl.BlockSpec((1, cout_pad, tile), lambda b, t: (b, 0, t)),
        # Per-step working set is tiny (<1 MiB incl. double buffers), so the
        # default scoped VMEM limit is fine on every generation incl. v7x
        # (64 MiB physical).  Both grid axes are fully independent -> parallel
        # lets v7x shard the grid across its 2 TensorCores.
        compiler_params=pltpu.CompilerParams(
            dimension_semantics=("parallel", "parallel")),
    )(x, w1c, b1c, w2c, b2c, m_sig, m_half)
    return out


def prediction_network_forward(features, params, num_anchors, num_classes,
                               pos_anchor_idx=None, neg_anchor_idx=None,
                               compute_dtype=jnp.float32):
    A, C = num_anchors, num_classes
    B, _, H, W = features.shape
    hw = H * W

    out = _run_pred_layer(features, params["w1"], params["b1"],
                          params["w2"], params["b2"], A, C,
                          compute_dtype=compute_dtype)       # (B, Cout_pad, HWp)
    out = out[:, :, :hw]                                     # strip spatial pad
    anc_data = out[:, :5 * A, :].reshape(B, A, 5, H, W)      # NCHW -> just reshape
    all_class_scores = out[:, 5 * A:5 * A + C, :].reshape(B, C, H, W)

    if pos_anchor_idx is None and neg_anchor_idx is None:
        conf_scores = anc_data[:, :, 0, :, :]                # (B, A, H, W)
        offsets = anc_data[:, :, 1:, :, :]                   # (B, A, 4, H, W)
        class_scores = all_class_scores                      # (B, C, H, W)
    else:
        # Training-time anchor extraction (data-dependent gather glue in JAX).
        # Flattening matches PyTorch: permute(0,1,3,4,2).view(-1, 5) == (B,A,H,W) order.
        flat = jnp.transpose(anc_data, (0, 1, 3, 4, 2)).reshape(-1, 5)   # (B*A*H*W, 5)
        pos_data = flat[pos_anchor_idx]
        neg_data = flat[neg_anchor_idx]
        conf_scores = jnp.concatenate([pos_data, neg_data], axis=0)[:, :1]  # (2M, 1)
        offsets = pos_data[:, 1:]                                           # (M, 4)
        cs = jnp.transpose(all_class_scores, (0, 2, 3, 1))                  # (B,H,W,C)
        cs = jnp.broadcast_to(cs[:, None], (B, A, H, W, C)).reshape(-1, C)
        class_scores = cs[pos_anchor_idx]                                   # (M, C)

    return conf_scores, offsets, class_scores


def _reference_forward(features, params, A, C):
    """Pure-JAX f32 reference of the inference path (numeric sanity check)."""
    B, Cin, H, W = features.shape
    hp = jax.lax.Precision.HIGHEST
    x = features.reshape(B, Cin, H * W)
    h = jnp.einsum("oc,bcs->bos", params["w1"], x, precision=hp) \
        + params["b1"][None, :, None]
    h = jnp.where(h > 0, h, 0.01 * h)
    y = jnp.einsum("oc,bcs->bos", params["w2"], h, precision=hp) \
        + params["b2"][None, :, None]
    y = y.reshape(B, 5 * A + C, H, W)
    anc = y[:, :5 * A].reshape(B, A, 5, H, W)
    cls = y[:, 5 * A:]
    sig = jax.nn.sigmoid(anc)
    anc = anc.at[:, :, 0].set(sig[:, :, 0])
    anc = anc.at[:, :, 1:3].set(sig[:, :, 1:3] - 0.5)
    return anc[:, :, 0], anc[:, :, 1:], cls


if __name__ == "__main__":
    # Small, module-consistent shapes: features are (B, in_dim, 7, 7).
    B, in_dim, H, W = 2, 16, 7, 7
    hidden_dim, A, C = 32, 9, 20

    key = jax.random.PRNGKey(0)
    k_feat, k_w1, k_b1, k_w2, k_b2, k_idx = jax.random.split(key, 6)

    features = jax.random.normal(k_feat, (B, in_dim, H, W), dtype=jnp.float32)

    # Conv2d 1x1 weights in PyTorch orientation (out_ch, in_ch), biases (out_ch,).
    params = {
        "w1": 0.1 * jax.random.normal(k_w1, (hidden_dim, in_dim), dtype=jnp.float32),
        "b1": 0.1 * jax.random.normal(k_b1, (hidden_dim,), dtype=jnp.float32),
        "w2": 0.1 * jax.random.normal(k_w2, (5 * A + C, hidden_dim), dtype=jnp.float32),
        "b2": 0.1 * jax.random.normal(k_b2, (5 * A + C,), dtype=jnp.float32),
    }

    # Inference path.
    conf, offs, cls = prediction_network_forward(features, params, A, C)
    jax.block_until_ready((conf, offs, cls))
    assert conf.shape == (B, A, H, W)
    assert offs.shape == (B, A, 4, H, W)
    assert cls.shape == (B, C, H, W)

    # Numeric sanity check against a pure-JAX f32 reference.
    conf_r, offs_r, cls_r = _reference_forward(features, params, A, C)
    for got, ref in ((conf, conf_r), (offs, offs_r), (cls, cls_r)):
        err = float(jnp.max(jnp.abs(got - ref)))
        assert err < 1e-2, f"max abs error {err}"

    # Training path (anchor gathers).
    M = 6
    pos_idx = jax.random.randint(k_idx, (M,), 0, B * A * H * W)
    neg_idx = (pos_idx + 7) % (B * A * H * W)
    conf_t, offs_t, cls_t = prediction_network_forward(
        features, params, A, C, pos_anchor_idx=pos_idx, neg_anchor_idx=neg_idx)
    jax.block_until_ready((conf_t, offs_t, cls_t))
    assert conf_t.shape == (2 * M, 1)
    assert offs_t.shape == (M, 4)
    assert cls_t.shape == (M, C)

    print("KERNEL_OK")
</pallas_src>

<mosaic_0001>
module attributes {stable_mosaic.version = 11 : i64} {
  func.func @_pred_kernel(%arg0: i32, %arg1: i32, %arg2: memref<1x16x128xf32, #tpu.memory_space<vmem>>, %arg3: memref<32x16xf32, #tpu.memory_space<vmem>>, %arg4: memref<32x1xf32, #tpu.memory_space<vmem>>, %arg5: memref<72x32xf32, #tpu.memory_space<vmem>>, %arg6: memref<72x1xf32, #tpu.memory_space<vmem>>, %arg7: memref<72x1xf32, #tpu.memory_space<vmem>>, %arg8: memref<72x1xf32, #tpu.memory_space<vmem>>, %arg9: memref<1x72x128xf32, #tpu.memory_space<vmem>>) attributes {dimension_semantics = [#tpu.dimension_semantics<parallel>, #tpu.dimension_semantics<parallel>], iteration_bounds = array<i64: 2, 1>, scalar_prefetch = 0 : i64, scratch_operands = 0 : i64, tpu.core_type = #tpu.core_type<tc>, window_params = [{transform_indices = @transform_0, window_bounds = array<i64: 1, 16, 128>}, {pipeline_mode = #tpu.pipeline_mode<synchronous>, transform_indices = @transform_1, window_bounds = array<i64: 32, 16>}, {pipeline_mode = #tpu.pipeline_mode<synchronous>, transform_indices = @transform_2, window_bounds = array<i64: 32, 1>}, {pipeline_mode = #tpu.pipeline_mode<synchronous>, transform_indices = @transform_3, window_bounds = array<i64: 72, 32>}, {pipeline_mode = #tpu.pipeline_mode<synchronous>, transform_indices = @transform_4, window_bounds = array<i64: 72, 1>}, {pipeline_mode = #tpu.pipeline_mode<synchronous>, transform_indices = @transform_5, window_bounds = array<i64: 72, 1>}, {pipeline_mode = #tpu.pipeline_mode<synchronous>, transform_indices = @transform_6, window_bounds = array<i64: 72, 1>}, {transform_indices = @transform_7, window_bounds = array<i64: 1, 72, 128>}]} {
    %c0 = arith.constant 0 : index
    %c0_0 = arith.constant 0 : index
    %c0_1 = arith.constant 0 : index
    %0 = vector.load %arg2[%c0, %c0_0, %c0_1] : memref<1x16x128xf32, #tpu.memory_space<vmem>>, vector<1x16x128xf32>
    %1 = vector.shape_cast %0 : vector<1x16x128xf32> to vector<16x128xf32>
    %c0_2 = arith.constant 0 : index
    %c0_3 = arith.constant 0 : index
    %2 = vector.load %arg3[%c0_2, %c0_3] : memref<32x16xf32, #tpu.memory_space<vmem>>, vector<32x16xf32>
    %cst = arith.constant dense<0.000000e+00> : vector<32x128xf32>
    %3 = tpu.matmul %2, %1, %cst {dimension_numbers = #tpu.dot_dimension_numbers<[1], [0], [0], [1], [0, 0, 1, 1], [], []>} : vector<32x16xf32>, vector<16x128xf32>, vector<32x128xf32> -> vector<32x128xf32>
    %c0_4 = arith.constant 0 : index
    %c0_5 = arith.constant 0 : index
    %4 = vector.load %arg4[%c0_4, %c0_5] : memref<32x1xf32, #tpu.memory_space<vmem>>, vector<32x1xf32>
    %5 = vector.broadcast %4 : vector<32x1xf32> to vector<32x128xf32>
    %6 = arith.addf %3, %5 : vector<32x128xf32>
    %cst_6 = arith.constant 0.000000e+00 : f32
    %7 = vector.broadcast %cst_6 : f32 to vector<32x128xf32>
    %8 = arith.cmpf ogt, %6, %7 : vector<32x128xf32>
    %cst_7 = arith.constant 0.00999999977 : f32
    %9 = vector.broadcast %cst_7 : f32 to vector<32x128xf32>
    %10 = arith.mulf %9, %6 : vector<32x128xf32>
    %11 = arith.select %8, %6, %10 : vector<32x128xi1>, vector<32x128xf32>
    %c0_8 = arith.constant 0 : index
    %c0_9 = arith.constant 0 : index
    %12 = vector.load %arg5[%c0_8, %c0_9] : memref<72x32xf32, #tpu.memory_space<vmem>>, vector<72x32xf32>
    %cst_10 = arith.constant dense<0.000000e+00> : vector<72x128xf32>
    %13 = tpu.matmul %12, %11, %cst_10 {dimension_numbers = #tpu.dot_dimension_numbers<[1], [0], [0], [1], [0, 0, 1, 1], [], []>} : vector<72x32xf32>, vector<32x128xf32>, vector<72x128xf32> -> vector<72x128xf32>
    %c0_11 = arith.constant 0 : index
    %c0_12 = arith.constant 0 : index
    %14 = vector.load %arg6[%c0_11, %c0_12] : memref<72x1xf32, #tpu.memory_space<vmem>>, vector<72x1xf32>
    %15 = vector.broadcast %14 : vector<72x1xf32> to vector<72x128xf32>
    %16 = arith.addf %13, %15 : vector<72x128xf32>
    %17 = arith.negf %16 : vector<72x128xf32>
    %18 = math.exp %17 : vector<72x128xf32>
    %cst_13 = arith.constant 1.000000e+00 : f32
    %19 = vector.broadcast %cst_13 : f32 to vector<72x128xf32>
    %20 = arith.addf %19, %18 : vector<72x128xf32>
    %21 = arith.divf %19, %20 : vector<72x128xf32>
    %c0_14 = arith.constant 0 : index
    %c0_15 = arith.constant 0 : index
    %22 = vector.load %arg7[%c0_14, %c0_15] : memref<72x1xf32, #tpu.memory_space<vmem>>, vector<72x1xf32>
    %23 = vector.shape_cast %22 : vector<72x1xf32> to vector<72x1xf32>
    %24 = vector.broadcast %23 : vector<72x1xf32> to vector<72x128xf32>
    %cst_16 = arith.constant 0.000000e+00 : f32
    %25 = vector.broadcast %cst_16 : f32 to vector<72x128xf32>
    %26 = arith.cmpf ogt, %24, %25 : vector<72x128xf32>
    %c0_17 = arith.constant 0 : index
    %c0_18 = arith.constant 0 : index
    %27 = vector.load %arg8[%c0_17, %c0_18] : memref<72x1xf32, #tpu.memory_space<vmem>>, vector<72x1xf32>
    %28 = vector.shape_cast %27 : vector<72x1xf32> to vector<72x1xf32>
    %29 = vector.broadcast %28 : vector<72x1xf32> to vector<72x128xf32>
    %cst_19 = arith.constant 0.000000e+00 : f32
    %30 = vector.broadcast %cst_19 : f32 to vector<72x128xf32>
    %31 = arith.cmpf ogt, %29, %30 : vector<72x128xf32>
    %cst_20 = arith.constant 5.000000e-01 : f32
    %32 = vector.broadcast %cst_20 : f32 to vector<72x128xf32>
    %33 = arith.subf %21, %32 : vector<72x128xf32>
    %34 = arith.select %31, %33, %16 : vector<72x128xi1>, vector<72x128xf32>
    %35 = arith.select %26, %21, %34 : vector<72x128xi1>, vector<72x128xf32>
    %c0_21 = arith.constant 0 : index
    %c0_22 = arith.constant 0 : index
    %c0_23 = arith.constant 0 : index
    %36 = vector.load %arg9[%c0_21, %c0_22, %c0_23] : memref<1x72x128xf32, #tpu.memory_space<vmem>>, vector<1x72x128xf32>
    %37 = vector.shape_cast %36 : vector<1x72x128xf32> to vector<72x128xf32>
    %38 = vector.shape_cast %35 : vector<72x128xf32> to vector<1x72x128xf32>
    tpu.vector_store %arg9[%c0_21, %c0_22, %c0_23], %38 {strides = array<i32>} : memref<1x72x128xf32, #tpu.memory_space<vmem>>, vector<1x72x128xf32>,
    return
  }
  func.func @transform_0(%arg0: i32, %arg1: i32) -> (i32, i32, i32) {
    %c0_i32 = arith.constant 0 : i32
    %c0_i32_0 = arith.constant 0 : i32
    return %arg0, %c0_i32, %arg1 : i32, i32, i32
  }
  func.func @transform_1(%arg0: i32, %arg1: i32) -> (i32, i32) {
    %c0_i32 = arith.constant 0 : i32
    %c0_i32_0 = arith.constant 0 : i32
    %c0_i32_1 = arith.constant 0 : i32
    return %c0_i32, %c0_i32_0 : i32, i32
  }
  func.func @transform_2(%arg0: i32, %arg1: i32) -> (i32, i32) {
    %c0_i32 = arith.constant 0 : i32
    %c0_i32_0 = arith.constant 0 : i32
    %c0_i32_1 = arith.constant 0 : i32
    return %c0_i32, %c0_i32_0 : i32, i32
  }
  func.func @transform_3(%arg0: i32, %arg1: i32) -> (i32, i32) {
    %c0_i32 = arith.constant 0 : i32
    %c0_i32_0 = arith.constant 0 : i32
    %c0_i32_1 = arith.constant 0 : i32
    return %c0_i32, %c0_i32_0 : i32, i32
  }
  func.func @transform_4(%arg0: i32, %arg1: i32) -> (i32, i32) {
    %c0_i32 = arith.constant 0 : i32
    %c0_i32_0 = arith.constant 0 : i32
    %c0_i32_1 = arith.constant 0 : i32
    return %c0_i32, %c0_i32_0 : i32, i32
  }
  func.func @transform_5(%arg0: i32, %arg1: i32) -> (i32, i32) {
    %c0_i32 = arith.constant 0 : i32
    %c0_i32_0 = arith.constant 0 : i32
    %c0_i32_1 = arith.constant 0 : i32
    return %c0_i32, %c0_i32_0 : i32, i32
  }
  func.func @transform_6(%arg0: i32, %arg1: i32) -> (i32, i32) {
    %c0_i32 = arith.constant 0 : i32
    %c0_i32_0 = arith.constant 0 : i32
    %c0_i32_1 = arith.constant 0 : i32
    return %c0_i32, %c0_i32_0 : i32, i32
  }
  func.func @transform_7(%arg0: i32, %arg1: i32) -> (i32, i32, i32) {
    %c0_i32 = arith.constant 0 : i32
    %c0_i32_0 = arith.constant 0 : i32
    return %arg0, %c0_i32, %arg1 : i32, i32, i32
  }
}

</mosaic_0001>

<llo_original>
// kernel: tpu_custom_call.1
$region0: #{tpu_custom_call.1}
  #allocation0 [shape = 'u32[]', space=smem, size = 0x4, offset = 0x4, fixed_abs, tag = 'smem constant byte address 0x4 - core index']
  #allocation1 [shape = 'u32[144,128]{1,0:T(1,128)}', space=vmem, size = 0x12000, scoped, tag = 'internal scratch']
  %s0 = inlined_call_operand.vmem [shape: f32[2,16,128], index: 0, kind: input, shape index: {}]
  %s1 = inlined_call_operand.vmem [shape: f32[32,16], index: 1, kind: input, shape index: {}]
  %s2 = inlined_call_operand.vmem [shape: f32[32,1], index: 2, kind: input, shape index: {}]
  %s3 = inlined_call_operand.vmem [shape: f32[72,32], index: 3, kind: input, shape index: {}]
  %s4 = inlined_call_operand.vmem [shape: f32[72,1], index: 4, kind: input, shape index: {}]
  %s5 = inlined_call_operand.vmem [shape: f32[72,1], index: 5, kind: input, shape index: {}]
  %s6 = inlined_call_operand.vmem [shape: f32[72,1], index: 6, kind: input, shape index: {}]
  %s7 = inlined_call_operand.hbm [shape: f32[2,72,128], index: 7, kind: output, shape index: {}]
  %s8 = sld [smem:[#allocation0]]
  $region61: #{tpu_custom_call.1} parent=0
    _
  %s10 = ssub.s32 1, %s8
  %s11 = scalar_select 0, %s10, %s8
  $region1: #{tpu_custom_call.1} parent=0
    #allocation2 [shape = 'u8[73728]{0}', space=vmem, size = 0x12000, scoped, tag = 'output window, operand 0']
    #allocation3 [shape = 's32[2]{0}', space=sflag, size = 0x8, scoped, tag = 'scoped memory for tpu_custom_call.1']
    %12 = vsyncpa [#allocation3], 0
    %s13 = scalar_lea.sflag [#allocation3], 1
    %14 = vsyncpa %s13, 0
    loop: start=0, step=1, limit=4
    $region2: #{tpu_custom_call.1} parent=1 // loop_pre_header
      _
    $region3: #{tpu_custom_call.1} parent=1 // loop_header
      %s16 = sphi 0, %s20
      %p17 = scmp.ge.s32.totalorder %s16, 4
      %s23 = sphi 0, %s35
      %s24 = sphi 0, %s31
      %s25 = sphi 0, %s23
      %s26 = sphi 0, %s24
      %s27 = sphi 0, %s25
      %s28 = sphi 0, %s26
      %s40 = sphi 0, %s42
      %s43 = sphi 0, %s40
      %s44 = sphi 0, %s43
      %s60 = sphi 0, %s44
      %s64 = sphi 0, %s64
      %s66 = sphi 0, %s64
      %s67 = sphi 0, %s66
      %s81 = sphi 0, %s67
      %s85 = sphi 0, %s85
      %s87 = sphi 0, %s85
      %s88 = sphi 0, %s87
      %s102 = sphi 0, %s88
      %s106 = sphi 0, %s106
      %s108 = sphi 0, %s106
      %s109 = sphi 0, %s108
      %s123 = sphi 0, %s109
      %s127 = sphi 0, %s127
      %s129 = sphi 0, %s127
      %s130 = sphi 0, %s129
      %s144 = sphi 0, %s130
      %s148 = sphi 0, %s148
      %s150 = sphi 0, %s148
      %s151 = sphi 0, %s150
      %s165 = sphi 0, %s151
      %s169 = sphi 0, %s169
      %s171 = sphi 0, %s169
      %s172 = sphi 0, %s171
      %s186 = sphi 0, %s172
      %s194 = sphi 0, %s196
      %s197 = sphi 0, %s194
      %s198 = sphi 0, %s197
      %s214 = sphi 0, %s198
    $region4: #{tpu_custom_call.1} parent=1 // loop_header_branch
      %19 = sbr.rel (%p17) target = $region8
    $region5: #{tpu_custom_call.1} parent=1 // loop_body
      %s21 = ssub.s32 %s16, 1
      %s22 = ssub.s32 %s16, 2
      %s29 = sadd.s32 1, %s24
      %p30 = scmp.ge.s32.totalorder %s29, 1
      %s31 = scalar_select %p30, 0, %s29
      %s32 = sadd.s32 1, %s23
      %s33 = scalar_select %p30, %s32, %s23
      %p34 = scmp.ge.s32.totalorder %s33, 2
      %s35 = scalar_select %p34, 0, %s33
      %s36 = ssub.s32 %s23, %s35
      %s37 = ssub.s32 %s24, %s31
      %s38 = sor.u32 %s36, %s37
      %p39 = scmp.eq.s32.totalorder %s38, 0
      %s41 = sadd.s32 %s40, 1
      %s42 = scalar_select %p39, %s40, %s41
      %p45 = pneg %p39
      %p46 = scmp.eq.s32.totalorder %s16, 1
      %p47 = por %p45, %p46
      %p48 = scmp.ne.s32.totalorder %s40, %s43
      %p49 = scmp.eq.s32.totalorder %s16, 0
      %p50 = por %p48, %p49
      %p51 = scmp.ne.s32.totalorder %s40, %s43
      %p52 = scmp.eq.s32.totalorder %s21, 1
      %p53 = por %p51, %p52
      %p54 = scmp.ne.s32.totalorder %s43, %s44
      %p55 = scmp.eq.s32.totalorder %s21, 0
      %p56 = por %p54, %p55
      %p57 = scmp.ne.s32.totalorder %s43, %s44
      %p58 = scmp.eq.s32.totalorder %s22, 1
      %p59 = por %p57, %p58
      %p61 = scmp.ne.s32.totalorder %s44, %s60
      %p62 = scmp.eq.s32.totalorder %s22, 0
      %p63 = por %p61, %p62
      %s65 = sadd.s32 %s64, 1
      %p68 = scmp.eq.s32.totalorder %s16, 1
      %p69 = scmp.ne.s32.totalorder %s64, %s66
      %p70 = scmp.eq.s32.totalorder %s16, 0
      %p71 = por %p69, %p70
      %p72 = scmp.ne.s32.totalorder %s64, %s66
      %p73 = scmp.eq.s32.totalorder %s21, 1
      %p74 = por %p72, %p73
      %p75 = scmp.ne.s32.totalorder %s66, %s67
      %p76 = scmp.eq.s32.totalorder %s21, 0
      %p77 = por %p75, %p76
      %p78 = scmp.ne.s32.totalorder %s66, %s67
      %p79 = scmp.eq.s32.totalorder %s22, 1
      %p80 = por %p78, %p79
      %p82 = scmp.ne.s32.totalorder %s67, %s81
      %p83 = scmp.eq.s32.totalorder %s22, 0
      %p84 = por %p82, %p83
      %s86 = sadd.s32 %s85, 1
      %p89 = scmp.eq.s32.totalorder %s16, 1
      %p90 = scmp.ne.s32.totalorder %s85, %s87
      %p91 = scmp.eq.s32.totalorder %s16, 0
      %p92 = por %p90, %p91
      %p93 = scmp.ne.s32.totalorder %s85, %s87
      %p94 = scmp.eq.s32.totalorder %s21, 1
      %p95 = por %p93, %p94
      %p96 = scmp.ne.s32.totalorder %s87, %s88
      %p97 = scmp.eq.s32.totalorder %s21, 0
      %p98 = por %p96, %p97
      %p99 = scmp.ne.s32.totalorder %s87, %s88
      %p100 = scmp.eq.s32.totalorder %s22, 1
      %p101 = por %p99, %p100
      %p103 = scmp.ne.s32.totalorder %s88, %s102
      %p104 = scmp.eq.s32.totalorder %s22, 0
      %p105 = por %p103, %p104
      %s107 = sadd.s32 %s106, 1
      %p110 = scmp.eq.s32.totalorder %s16, 1
      %p111 = scmp.ne.s32.totalorder %s106, %s108
      %p112 = scmp.eq.s32.totalorder %s16, 0
      %p113 = por %p111, %p112
      %p114 = scmp.ne.s32.totalorder %s106, %s108
      %p115 = scmp.eq.s32.totalorder %s21, 1
      %p116 = por %p114, %p115
      %p117 = scmp.ne.s32.totalorder %s108, %s109
      %p118 = scmp.eq.s32.totalorder %s21, 0
      %p119 = por %p117, %p118
      %p120 = scmp.ne.s32.totalorder %s108, %s109
      %p121 = scmp.eq.s32.totalorder %s22, 1
      %p122 = por %p120, %p121
      %p124 = scmp.ne.s32.totalorder %s109, %s123
      %p125 = scmp.eq.s32.totalorder %s22, 0
      %p126 = por %p124, %p125
      %s128 = sadd.s32 %s127, 1
      %p131 = scmp.eq.s32.totalorder %s16, 1
      %p132 = scmp.ne.s32.totalorder %s127, %s129
      %p133 = scmp.eq.s32.totalorder %s16, 0
      %p134 = por %p132, %p133
      %p135 = scmp.ne.s32.totalorder %s127, %s129
      %p136 = scmp.eq.s32.totalorder %s21, 1
      %p137 = por %p135, %p136
      %p138 = scmp.ne.s32.totalorder %s129, %s130
      %p139 = scmp.eq.s32.totalorder %s21, 0
      %p140 = por %p138, %p139
      %p141 = scmp.ne.s32.totalorder %s129, %s130
      %p142 = scmp.eq.s32.totalorder %s22, 1
      %p143 = por %p141, %p142
      %p145 = scmp.ne.s32.totalorder %s130, %s144
      %p146 = scmp.eq.s32.totalorder %s22, 0
      %p147 = por %p145, %p146
      %s149 = sadd.s32 %s148, 1
      %p152 = scmp.eq.s32.totalorder %s16, 1
      %p153 = scmp.ne.s32.totalorder %s148, %s150
      %p154 = scmp.eq.s32.totalorder %s16, 0
      %p155 = por %p153, %p154
      %p156 = scmp.ne.s32.totalorder %s148, %s150
      %p157 = scmp.eq.s32.totalorder %s21, 1
      %p158 = por %p156, %p157
      %p159 = scmp.ne.s32.totalorder %s150, %s151
      %p160 = scmp.eq.s32.totalorder %s21, 0
      %p161 = por %p159, %p160
      %p162 = scmp.ne.s32.totalorder %s150, %s151
      %p163 = scmp.eq.s32.totalorder %s22, 1
      %p164 = por %p162, %p163
      %p166 = scmp.ne.s32.totalorder %s151, %s165
      %p167 = scmp.eq.s32.totalorder %s22, 0
      %p168 = por %p166, %p167
      %s170 = sadd.s32 %s169, 1
      %p173 = scmp.eq.s32.totalorder %s16, 1
      %p174 = scmp.ne.s32.totalorder %s169, %s171
      %p175 = scmp.eq.s32.totalorder %s16, 0
      %p176 = por %p174, %p175
      %p177 = scmp.ne.s32.totalorder %s169, %s171
      %p178 = scmp.eq.s32.totalorder %s21, 1
      %p179 = por %p177, %p178
      %p180 = scmp.ne.s32.totalorder %s171, %s172
      %p181 = scmp.eq.s32.totalorder %s21, 0
      %p182 = por %p180, %p181
      %p183 = scmp.ne.s32.totalorder %s171, %s172
      %p184 = scmp.eq.s32.totalorder %s22, 1
      %p185 = por %p183, %p184
      %p187 = scmp.ne.s32.totalorder %s172, %s186
      %p188 = scmp.eq.s32.totalorder %s22, 0
      %p189 = por %p187, %p188
      %s190 = ssub.s32 %s23, %s35
      %s191 = ssub.s32 %s24, %s31
      %s192 = sor.u32 %s190, %s191
      %p193 = scmp.eq.s32.totalorder %s192, 0
      %s195 = sadd.s32 %s194, 1
      %s196 = scalar_select %p193, %s194, %s195
      %p199 = pneg %p193
      %p200 = scmp.eq.s32.totalorder %s16, 1
      %p201 = por %p199, %p200
      %p202 = scmp.ne.s32.totalorder %s194, %s197
      %p203 = scmp.eq.s32.totalorder %s16, 0
      %p204 = por %p202, %p203
      %p205 = scmp.ne.s32.totalorder %s194, %s197
      %p206 = scmp.eq.s32.totalorder %s21, 1
      %p207 = por %p205, %p206
      %p208 = scmp.ne.s32.totalorder %s197, %s198
      %p209 = scmp.eq.s32.totalorder %s21, 0
      %p210 = por %p208, %p209
      %p211 = scmp.ne.s32.totalorder %s197, %s198
      %p212 = scmp.eq.s32.totalorder %s22, 1
      %p213 = por %p211, %p212
      %p215 = scmp.ne.s32.totalorder %s198, %s214
      %p216 = scmp.eq.s32.totalorder %s22, 0
      %p217 = por %p215, %p216
      %p218 = scmp.le.s32.totalorder 1, %s16
      %p219 = scmp.lt.s32.totalorder %s16, 3
      %p220 = pnand %p218, %p219
      %p221 = pneg %p220
      // Predicated region
      $region9: #{tpu_custom_call.1} parent=5 // pred_check
        _
      $region10: #{tpu_custom_call.1} parent=5 // pred_check_branch
        %223 = sbr.rel (%p220) target = $region12
      $region11: #{tpu_custom_call.1} parent=5 // pred_region
        %s224 = ssub.s32 %s16, 1
        // Predicated region
        $region13: #{tpu_custom_call.1} parent=11 // pred_check
          %p225 = pneg %p77
        $region14: #{tpu_custom_call.1} parent=11 // pred_check_branch
          %227 = sbr.rel (%p225) target = $region16
        $region15: #{tpu_custom_call.1} parent=11 // pred_region
          _
        $region16: #{tpu_custom_call.1} parent=11 // pred_fallthru
          _
        // Predicated region
        $region17: #{tpu_custom_call.1} parent=11 // pred_check
          %p228 = pneg %p98
        $region18: #{tpu_custom_call.1} parent=11 // pred_check_branch
          %230 = sbr.rel (%p228) target = $region20
        $region19: #{tpu_custom_call.1} parent=11 // pred_region
          _
        $region20: #{tpu_custom_call.1} parent=11 // pred_fallthru
          _
        // Predicated region
        $region21: #{tpu_custom_call.1} parent=11 // pred_check
          %p231 = pneg %p119
        $region22: #{tpu_custom_call.1} parent=11 // pred_check_branch
          %233 = sbr.rel (%p231) target = $region24
        $region23: #{tpu_custom_call.1} parent=11 // pred_region
          _
        $region24: #{tpu_custom_call.1} parent=11 // pred_fallthru
          _
        // Predicated region
        $region25: #{tpu_custom_call.1} parent=11 // pred_check
          %p234 = pneg %p140
        $region26: #{tpu_custom_call.1} parent=11 // pred_check_branch
          %236 = sbr.rel (%p234) target = $region28
        $region27: #{tpu_custom_call.1} parent=11 // pred_region
          _
        $region28: #{tpu_custom_call.1} parent=11 // pred_fallthru
          _
        // Predicated region
        $region29: #{tpu_custom_call.1} parent=11 // pred_check
          %p237 = pneg %p161
        $region30: #{tpu_custom_call.1} parent=11 // pred_check_branch
          %239 = sbr.rel (%p237) target = $region32
        $region31: #{tpu_custom_call.1} parent=11 // pred_region
          _
        $region32: #{tpu_custom_call.1} parent=11 // pred_fallthru
          _
        // Predicated region
        $region33: #{tpu_custom_call.1} parent=11 // pred_check
          %p240 = pneg %p182
        $region34: #{tpu_custom_call.1} parent=11 // pred_check_branch
          %242 = sbr.rel (%p240) target = $region36
        $region35: #{tpu_custom_call.1} parent=11 // pred_region
          _
        $region36: #{tpu_custom_call.1} parent=11 // pred_fallthru
          _
      $region12: #{tpu_custom_call.1} parent=5 // pred_fallthru
        _
      %p243 = scmp.lt.s32.totalorder %s16, 2
      // Predicated region
      $region37: #{tpu_custom_call.1} parent=5 // pred_check
        %p244 = pneg %p243
      $region38: #{tpu_custom_call.1} parent=5 // pred_check_branch
        %246 = sbr.rel (%p244) target = $region40
      $region39: #{tpu_custom_call.1} parent=5 // pred_region
        // Predicated region
        $region41: #{tpu_custom_call.1} parent=39 // pred_check
          %p247 = pneg %p50
        $region42: #{tpu_custom_call.1} parent=39 // pred_check_branch
          %249 = sbr.rel (%p247) target = $region44
        $region43: #{tpu_custom_call.1} parent=39 // pred_region
          %p250 = scmp.lt.s32.totalorder %s23, 1
          %s251 = scalar_select %p250, %s23, 1
          %p252 = scmp.lt.s32.totalorder %s24, 0
          %s253 = scalar_select %p252, %s24, 0
          %s254 = smul.addr %s251, 2
          %s255 = sadd.s32 %s253, %s254
          %s256 = smul.addr %s255, 8
          %s257 = scalar_lea.vmem %s0, %s256
        $region44: #{tpu_custom_call.1} parent=39 // pred_fallthru
          _
      $region40: #{tpu_custom_call.1} parent=5 // pred_fallthru
        _
      %p258 = scmp.le.s32.totalorder 1, %s16
      %p259 = scmp.lt.s32.totalorder %s16, 3
      %p260 = pnand %p258, %p259
      %p261 = pneg %p260
      // Predicated region
      $region45: #{tpu_custom_call.1} parent=5 // pred_check
        _
      $region46: #{tpu_custom_call.1} parent=5 // pred_check_branch
        %263 = sbr.rel (%p260) target = $region48
      $region47: #{tpu_custom_call.1} parent=5 // pred_region
        %s264 = ssub.s32 %s16, 1
        %p265 = scmp.lt.s32.totalorder %s25, 1
        %s266 = scalar_select %p265, %s25, 1
        %p267 = scmp.lt.s32.totalorder %s26, 0
        %s268 = scalar_select %p267, %s26, 0
        %s269 = smul.addr %s266, 2
        %s270 = sadd.s32 %s268, %s269
        %s271 = smul.addr %s270, 8
        %s272 = scalar_lea.vmem %s0, %s271
        %p273 = pneg %p56
        %p274 = pneg %p53
        %p275 = pneg %p77
        %p276 = pneg %p74
        %p277 = pneg %p98
        %p278 = pneg %p95
        %p279 = pneg %p119
        %p280 = pneg %p116
        %p281 = pneg %p140
        %p282 = pneg %p137
        %p283 = pneg %p161
        %p284 = pneg %p158
        %p285 = pneg %p182
        %p286 = pneg %p179
        %p287 = pneg %p210
        %p288 = pneg %p207
        %s289 = sand.u32 %s197, 1
        %s290 = scalar_lea.sflag [#allocation3], %s289
        %s291 = sand.u32 %s197, 1
        %s292 = smul.addr %s291, 72
        %s293 = scalar_lea.vmem [#allocation2], %s292
        %p294 = scmp.lt.s32.totalorder %s25, 1
        %s295 = scalar_select %p294, %s25, 1
        %p296 = scmp.lt.s32.totalorder %s26, 0
        %s297 = scalar_select %p296, %s26, 0
        %s298 = smul.addr %s295, 2
        %s299 = sadd.s32 %s297, %s298
        %s300 = smul.addr %s299, 8
        %s301 = scalar_lea.vmem %s0, %s300
        %v302 = vld [vmem:[%s301] sm:$0xff]
        %v303 = vld [vmem:[%s301 + $0x8] sm:$0xff]
        %v304 = vld [vmem:[%s1] sm:$0xff]
        %v305 = vld [vmem:[%s1 + $0x8] sm:$0xff]
        %v306 = vld [vmem:[%s1 + $0x10] sm:$0xff]
        %v307 = vld [vmem:[%s1 + $0x18] sm:$0xff]
        %v308 = vld [vmem:[%s2] sm:$0xff]
        %v309 = vld [vmem:[%s2 + $0x8] sm:$0xff]
        %v310 = vld [vmem:[%s2 + $0x10] sm:$0xff]
        %v311 = vld [vmem:[%s2 + $0x18] sm:$0xff]
        %313 = vset.pattern.permute.xlu0 0
        %314 = vperm.xlu0 %313, %v308
        %v315 = vpop.permute.xlu0 %314
        %318 = vset.pattern.permute.xlu0 0
        %319 = vperm.xlu0 %318, %v309
        %v320 = vpop.permute.xlu0 %319
        %323 = vset.pattern.permute.xlu0 0
        %324 = vperm.xlu0 %323, %v310
        %v325 = vpop.permute.xlu0 %324
        %328 = vset.pattern.permute.xlu0 0
        %329 = vperm.xlu0 %328, %v311
        %v330 = vpop.permute.xlu0 %329
        %vm332 = vcmask 130048
        %v334 = vsel %vm332, %v304, 0
        %v337 = vsel %vm332, %v305, 0
        %v340 = vsel %vm332, %v306, 0
        %v343 = vsel %vm332, %v307, 0
        %345 = vmatprep.subr.mxu0 0.0
        %346 = vmatpush1.msra.mxu0 0.0
        %347 = vmatprep.subr.mxu0 0.0
        %348 = vmatpush1.msra.mxu0 0.0
        %349 = vmatprep.subr.mxu0 0.0
        %350 = vmatpush1.msra.mxu0 0.0
        %351 = vmatprep.subr.mxu0 0.0
        %352 = vmatpush1.msra.mxu0 0.0
        %353 = vmatprep.subr.mxu0 0.0
        %354 = vmatpush1.msra.mxu0 0.0
        %355 = vmatprep.subr.mxu0 0.0
        %356 = vmatpush1.msra.mxu0 0.0
        %357 = vmatprep.subr.mxu0 0.0
        %358 = vmatpush1.msra.mxu0 0.0
        %359 = vmatprep.subr.mxu0 0.0
        %360 = vmatpush1.msra.mxu0 0.0
        %361 = vmatprep.subr.mxu0 0.0
        %362 = vmatpush1.msra.mxu0 0.0
        %363 = vmatprep.subr.mxu0 0.0
        %364 = vmatpush1.msra.mxu0 0.0
        %365 = vmatprep.subr.mxu0 0.0
        %366 = vmatpush1.msra.mxu0 0.0
        %367 = vmatprep.subr.mxu0 0.0
        %368 = vmatpush1.msra.mxu0 0.0
        %369 = vmatprep.subr.mxu0 0.0
        %370 = vmatpush1.msra.mxu0 0.0
        %371 = vmatprep.subr.mxu0 0.0
        %372 = vmatpush1.msra.mxu0 0.0
        %373 = vmatprep.subr.mxu0 0.0
        %374 = vmatpush1.msra.mxu0 %v303
        %375 = vmatprep.subr.mxu0 0.0
        %376 = vmatpush1.msra.mxu0 %v302
        %377 = vmatprep.subr.mxu0 0.0
        %378 = vmatpush2.msra.mxu0 0.0
        %379 = vmatprep.subr.mxu0 0.0
        %380 = vmatpush2.msra.mxu0 0.0
        %381 = vmatprep.subr.mxu0 0.0
        %382 = vmatpush2.msra.mxu0 0.0
        %383 = vmatprep.subr.mxu0 0.0
        %384 = vmatpush2.msra.mxu0 0.0
        %385 = vmatprep.subr.mxu0 0.0
        %386 = vmatpush2.msra.mxu0 0.0
        %387 = vmatprep.subr.mxu0 0.0
        %388 = vmatpush2.msra.mxu0 0.0
        %389 = vmatprep.subr.mxu0 0.0
        %390 = vmatpush2.msra.mxu0 0.0
        %391 = vmatprep.subr.mxu0 0.0
        %392 = vmatpush2.msra.mxu0 0.0
        %393 = vmatprep.subr.mxu0 0.0
        %394 = vmatpush2.msra.mxu0 0.0
        %395 = vmatprep.subr.mxu0 0.0
        %396 = vmatpush2.msra.mxu0 0.0
        %397 = vmatprep.subr.mxu0 0.0
        %398 = vmatpush2.msra.mxu0 0.0
        %399 = vmatprep.subr.mxu0 0.0
        %400 = vmatpush2.msra.mxu0 0.0
        %401 = vmatprep.subr.mxu0 0.0
        %402 = vmatpush2.msra.mxu0 0.0
        %403 = vmatprep.subr.mxu0 0.0
        %404 = vmatpush2.msra.mxu0 0.0
        %405 = vmatprep.subr.mxu0 0.0
        %406 = vmatpush2.msra.mxu0 0.0
        %407 = vmatprep.subr.mxu0 0.0
        %408 = vmatpush2.msra.mxu0 0.0
        %409 = vmatprep.mubr.f32.mxu0 0.0
        %410 = vmatmul.mubr.f32.gmra.mxu0 %v334
        %v411 = vpop.f32.mrf.mxu0
        %v412 = vadd.f32 %v315, %v411
        %v413 = vpop.f32.mrf.mxu0
        %414 = vmatprep.mubr.f32.mxu0 0.0
        %415 = vmatmul.mubr.f32.gmra.mxu0 %v337
        %v416 = vpop.f32.mrf.mxu0
        %v417 = vadd.f32 %v320, %v416
        %v418 = vpop.f32.mrf.mxu0
        %419 = vmatprep.mubr.f32.mxu0 0.0
        %420 = vmatmul.mubr.f32.gmra.mxu0 %v340
        %v421 = vpop.f32.mrf.mxu0
        %v422 = vadd.f32 %v325, %v421
        %v423 = vpop.f32.mrf.mxu0
        %424 = vmatprep.mubr.f32.mxu0 0.0
        %425 = vmatmul.mubr.f32.gmra.mxu0 %v343
        %v426 = vpop.f32.mrf.mxu0
        %v427 = vadd.f32 %v330, %v426
        %v428 = vpop.f32.mrf.mxu0
        %429 = vdwg.mxu0
        %vm430 = vcmp.gt.f32.partialorder %v412, 0.0
        %vm431 = vcmp.gt.f32.partialorder %v417, 0.0
        %vm432 = vcmp.gt.f32.partialorder %v422, 0.0
        %vm433 = vcmp.gt.f32.partialorder %v427, 0.0
        %v434 = vmul.f32 %v412, 0.01
        %v435 = vmul.f32 %v417, 0.01
        %v436 = vmul.f32 %v422, 0.01
        %v437 = vmul.f32 %v427, 0.01
        %v438 = vsel %vm430, %v412, %v434
        %v439 = vsel %vm431, %v417, %v435
        %v440 = vsel %vm432, %v422, %v436
        %v441 = vsel %vm433, %v427, %v437
        %v442 = vld [vmem:[%s3] sm:$0xff]
        %v443 = vld [vmem:[%s3 + $0x8] sm:$0xff]
        %v444 = vld [vmem:[%s3 + $0x10] sm:$0xff]
        %v445 = vld [vmem:[%s3 + $0x18] sm:$0xff]
        %v446 = vld [vmem:[%s3 + $0x20] sm:$0xff]
        %v447 = vld [vmem:[%s3 + $0x28] sm:$0xff]
        %v448 = vld [vmem:[%s3 + $0x30] sm:$0xff]
        %v449 = vld [vmem:[%s3 + $0x38] sm:$0xff]
        %v450 = vld [vmem:[%s3 + $0x40] sm:$0xff]
        %v451 = vld [vmem:[%s4] sm:$0xff]
        %v452 = vld [vmem:[%s4 + $0x8] sm:$0xff]
        %v453 = vld [vmem:[%s4 + $0x10] sm:$0xff]
        %v454 = vld [vmem:[%s4 + $0x18] sm:$0xff]
        %v455 = vld [vmem:[%s4 + $0x20] sm:$0xff]
        %v456 = vld [vmem:[%s4 + $0x28] sm:$0xff]
        %v457 = vld [vmem:[%s4 + $0x30] sm:$0xff]
        %v458 = vld [vmem:[%s4 + $0x38] sm:$0xff]
        %v459 = vld [vmem:[%s4 + $0x40] sm:$0xff]
        %461 = vset.pattern.permute.xlu0 0
        %462 = vperm.xlu0 %461, %v451
        %v463 = vpop.permute.xlu0 %462
        %466 = vset.pattern.permute.xlu0 0
        %467 = vperm.xlu0 %466, %v452
        %v468 = vpop.permute.xlu0 %467
        %471 = vset.pattern.permute.xlu0 0
        %472 = vperm.xlu0 %471, %v453
        %v473 = vpop.permute.xlu0 %472
        %476 = vset.pattern.permute.xlu0 0
        %477 = vperm.xlu0 %476, %v454
        %v478 = vpop.permute.xlu0 %477
        %481 = vset.pattern.permute.xlu0 0
        %482 = vperm.xlu0 %481, %v455
        %v483 = vpop.permute.xlu0 %482
        %486 = vset.pattern.permute.xlu0 0
        %487 = vperm.xlu0 %486, %v456
        %v488 = vpop.permute.xlu0 %487
        %491 = vset.pattern.permute.xlu0 0
        %492 = vperm.xlu0 %491, %v457
        %v493 = vpop.permute.xlu0 %492
        %496 = vset.pattern.permute.xlu0 0
        %497 = vperm.xlu0 %496, %v458
        %v498 = vpop.permute.xlu0 %497
        %501 = vset.pattern.permute.xlu0 0
        %502 = vperm.xlu0 %501, %v459
        %v503 = vpop.permute.xlu0 %502
        %vm505 = vcmask 261120
        %v507 = vsel %vm505, %v442, 0
        %v510 = vsel %vm505, %v443, 0
        %v513 = vsel %vm505, %v444, 0
        %v516 = vsel %vm505, %v445, 0
        %v519 = vsel %vm505, %v446, 0
        %v522 = vsel %vm505, %v447, 0
        %v525 = vsel %vm505, %v448, 0
        %v528 = vsel %vm505, %v449, 0
        %v531 = vsel %vm505, %v450, 0
        %533 = vmatprep.subr.mxu0 0.0
        %534 = vmatpush1.msra.mxu0 0.0
        %535 = vmatprep.subr.mxu0 0.0
        %536 = vmatpush1.msra.mxu0 0.0
        %537 = vmatprep.subr.mxu0 0.0
        %538 = vmatpush1.msra.mxu0 0.0
        %539 = vmatprep.subr.mxu0 0.0
        %540 = vmatpush1.msra.mxu0 0.0
        %541 = vmatprep.subr.mxu0 0.0
        %542 = vmatpush1.msra.mxu0 0.0
        %543 = vmatprep.subr.mxu0 0.0
        %544 = vmatpush1.msra.mxu0 0.0
        %545 = vmatprep.subr.mxu0 0.0
        %546 = vmatpush1.msra.mxu0 0.0
        %547 = vmatprep.subr.mxu0 0.0
        %548 = vmatpush1.msra.mxu0 0.0
        %549 = vmatprep.subr.mxu0 0.0
        %550 = vmatpush1.msra.mxu0 0.0
        %551 = vmatprep.subr.mxu0 0.0
        %552 = vmatpush1.msra.mxu0 0.0
        %553 = vmatprep.subr.mxu0 0.0
        %554 = vmatpush1.msra.mxu0 0.0
        %555 = vmatprep.subr.mxu0 0.0
        %556 = vmatpush1.msra.mxu0 0.0
        %557 = vmatprep.subr.mxu0 0.0
        %558 = vmatpush1.msra.mxu0 %v441
        %559 = vmatprep.subr.mxu0 0.0
        %560 = vmatpush1.msra.mxu0 %v440
        %561 = vmatprep.subr.mxu0 0.0
        %562 = vmatpush1.msra.mxu0 %v439
        %563 = vmatprep.subr.mxu0 0.0
        %564 = vmatpush1.msra.mxu0 %v438
        %565 = vmatprep.subr.mxu0 0.0
        %566 = vmatpush2.msra.mxu0 0.0
        %567 = vmatprep.subr.mxu0 0.0
        %568 = vmatpush2.msra.mxu0 0.0
        %569 = vmatprep.subr.mxu0 0.0
        %570 = vmatpush2.msra.mxu0 0.0
        %571 = vmatprep.subr.mxu0 0.0
        %572 = vmatpush2.msra.mxu0 0.0
        %573 = vmatprep.subr.mxu0 0.0
        %574 = vmatpush2.msra.mxu0 0.0
        %575 = vmatprep.subr.mxu0 0.0
        %576 = vmatpush2.msra.mxu0 0.0
        %577 = vmatprep.subr.mxu0 0.0
        %578 = vmatpush2.msra.mxu0 0.0
        %579 = vmatprep.subr.mxu0 0.0
        %580 = vmatpush2.msra.mxu0 0.0
        %581 = vmatprep.subr.mxu0 0.0
        %582 = vmatpush2.msra.mxu0 0.0
        %583 = vmatprep.subr.mxu0 0.0
        %584 = vmatpush2.msra.mxu0 0.0
        %585 = vmatprep.subr.mxu0 0.0
        %586 = vmatpush2.msra.mxu0 0.0
        %587 = vmatprep.subr.mxu0 0.0
        %588 = vmatpush2.msra.mxu0 0.0
        %589 = vmatprep.subr.mxu0 0.0
        %590 = vmatpush2.msra.mxu0 0.0
        %591 = vmatprep.subr.mxu0 0.0
        %592 = vmatpush2.msra.mxu0 0.0
        %593 = vmatprep.subr.mxu0 0.0
        %594 = vmatpush2.msra.mxu0 0.0
        %595 = vmatprep.subr.mxu0 0.0
        %596 = vmatpush2.msra.mxu0 0.0
        %597 = vmatprep.mubr.f32.mxu0 0.0
        %598 = vmatmul.mubr.f32.gmra.mxu0 %v507
        %v599 = vpop.f32.mrf.mxu0
        %v600 = vadd.f32 %v463, %v599
        %v601 = vpop.f32.mrf.mxu0
        %602 = vmatprep.mubr.f32.mxu0 0.0
        %603 = vmatmul.mubr.f32.gmra.mxu0 %v510
        %v604 = vpop.f32.mrf.mxu0
        %v605 = vadd.f32 %v468, %v604
        %v606 = vpop.f32.mrf.mxu0
        %607 = vmatprep.mubr.f32.mxu0 0.0
        %608 = vmatmul.mubr.f32.gmra.mxu0 %v513
        %v609 = vpop.f32.mrf.mxu0
        %v610 = vadd.f32 %v473, %v609
        %v611 = vpop.f32.mrf.mxu0
        %612 = vmatprep.mubr.f32.mxu0 0.0
        %613 = vmatmul.mubr.f32.gmra.mxu0 %v516
        %v614 = vpop.f32.mrf.mxu0
        %v615 = vadd.f32 %v478, %v614
        %v616 = vpop.f32.mrf.mxu0
        %617 = vmatprep.mubr.f32.mxu0 0.0
        %618 = vmatmul.mubr.f32.gmra.mxu0 %v519
        %v619 = vpop.f32.mrf.mxu0
        %v620 = vadd.f32 %v483, %v619
        %v621 = vpop.f32.mrf.mxu0
        %622 = vmatprep.mubr.f32.mxu0 0.0
        %623 = vmatmul.mubr.f32.gmra.mxu0 %v522
        %v624 = vpop.f32.mrf.mxu0
        %v625 = vadd.f32 %v488, %v624
        %v626 = vpop.f32.mrf.mxu0
        %627 = vmatprep.mubr.f32.mxu0 0.0
        %628 = vmatmul.mubr.f32.gmra.mxu0 %v525
        %v629 = vpop.f32.mrf.mxu0
        %v630 = vadd.f32 %v493, %v629
        %v631 = vpop.f32.mrf.mxu0
        %632 = vmatprep.mubr.f32.mxu0 0.0
        %633 = vmatmul.mubr.f32.gmra.mxu0 %v528
        %v634 = vpop.f32.mrf.mxu0
        %v635 = vadd.f32 %v498, %v634
        %v636 = vpop.f32.mrf.mxu0
        %637 = vmatprep.mubr.f32.mxu0 0.0
        %638 = vmatmul.mubr.f32.gmra.mxu0 %v531
        %v639 = vpop.f32.mrf.mxu0
        %v640 = vadd.f32 %v503, %v639
        %v641 = vpop.f32.mrf.mxu0
        %642 = vdwg.mxu0
        %v643 = vxor.u32 %v600, 2147483648
        %v644 = vxor.u32 %v605, 2147483648
        %v645 = vxor.u32 %v610, 2147483648
        %v646 = vxor.u32 %v615, 2147483648
        %v647 = vxor.u32 %v620, 2147483648
        %v648 = vxor.u32 %v625, 2147483648
        %v649 = vxor.u32 %v630, 2147483648
        %v650 = vxor.u32 %v635, 2147483648
        %v651 = vxor.u32 %v640, 2147483648
        %v652 = vmul.f32 %v643, 1.442695
        %v653 = vpow.pop %v652
        %v654 = vmul.f32 %v644, 1.442695
        %v655 = vpow.pop %v654
        %v656 = vmul.f32 %v645, 1.442695
        %v657 = vpow.pop %v656
        %v658 = vmul.f32 %v646, 1.442695
        %v659 = vpow.pop %v658
        %v660 = vmul.f32 %v647, 1.442695
        %v661 = vpow.pop %v660
        %v662 = vmul.f32 %v648, 1.442695
        %v663 = vpow.pop %v662
        %v664 = vmul.f32 %v649, 1.442695
        %v665 = vpow.pop %v664
        %v666 = vmul.f32 %v650, 1.442695
        %v667 = vpow.pop %v666
        %v668 = vmul.f32 %v651, 1.442695
        %v669 = vpow.pop %v668
        %v670 = vadd.f32 %v653, 1.0
        %v671 = vadd.f32 %v655, 1.0
        %v672 = vadd.f32 %v657, 1.0
        %v673 = vadd.f32 %v659, 1.0
        %v674 = vadd.f32 %v661, 1.0
        %v675 = vadd.f32 %v663, 1.0
        %v676 = vadd.f32 %v665, 1.0
        %v677 = vadd.f32 %v667, 1.0
        %v678 = vadd.f32 %v669, 1.0
        %v679 = vrcp.pop %v670
        %v680 = vmul.f32 1.0, %v679
        %v681 = vrcp.pop %v671
        %v682 = vmul.f32 1.0, %v681
        %v683 = vrcp.pop %v672
        %v684 = vmul.f32 1.0, %v683
        %v685 = vrcp.pop %v673
        %v686 = vmul.f32 1.0, %v685
        %v687 = vrcp.pop %v674
        %v688 = vmul.f32 1.0, %v687
        %v689 = vrcp.pop %v675
        %v690 = vmul.f32 1.0, %v689
        %v691 = vrcp.pop %v676
        %v692 = vmul.f32 1.0, %v691
        %v693 = vrcp.pop %v677
        %v694 = vmul.f32 1.0, %v693
        %v695 = vrcp.pop %v678
        %v696 = vmul.f32 1.0, %v695
        %v697 = vld [vmem:[%s5] sm:$0xff]
        %v698 = vld [vmem:[%s5 + $0x8] sm:$0xff]
        %v699 = vld [vmem:[%s5 + $0x10] sm:$0xff]
        %v700 = vld [vmem:[%s5 + $0x18] sm:$0xff]
        %v701 = vld [vmem:[%s5 + $0x20] sm:$0xff]
        %v702 = vld [vmem:[%s5 + $0x28] sm:$0xff]
        %v703 = vld [vmem:[%s5 + $0x30] sm:$0xff]
        %v704 = vld [vmem:[%s5 + $0x38] sm:$0xff]
        %v705 = vld [vmem:[%s5 + $0x40] sm:$0xff]
        %707 = vset.pattern.permute.xlu0 0
        %708 = vperm.xlu0 %707, %v697
        %v709 = vpop.permute.xlu0 %708
        %712 = vset.pattern.permute.xlu0 0
        %713 = vperm.xlu0 %712, %v698
        %v714 = vpop.permute.xlu0 %713
        %717 = vset.pattern.permute.xlu0 0
        %718 = vperm.xlu0 %717, %v699
        %v719 = vpop.permute.xlu0 %718
        %722 = vset.pattern.permute.xlu0 0
        %723 = vperm.xlu0 %722, %v700
        %v724 = vpop.permute.xlu0 %723
        %727 = vset.pattern.permute.xlu0 0
        %728 = vperm.xlu0 %727, %v701
        %v729 = vpop.permute.xlu0 %728
        %732 = vset.pattern.permute.xlu0 0
        %733 = vperm.xlu0 %732, %v702
        %v734 = vpop.permute.xlu0 %733
        %737 = vset.pattern.permute.xlu0 0
        %738 = vperm.xlu0 %737, %v703
        %v739 = vpop.permute.xlu0 %738
        %742 = vset.pattern.permute.xlu0 0
        %743 = vperm.xlu0 %742, %v704
        %v744 = vpop.permute.xlu0 %743
        %747 = vset.pattern.permute.xlu0 0
        %748 = vperm.xlu0 %747, %v705
        %v749 = vpop.permute.xlu0 %748
        %vm751 = vcmp.gt.f32.partialorder %v709, 0.0
        %vm752 = vcmp.gt.f32.partialorder %v714, 0.0
        %vm753 = vcmp.gt.f32.partialorder %v719, 0.0
        %vm754 = vcmp.gt.f32.partialorder %v724, 0.0
        %vm755 = vcmp.gt.f32.partialorder %v729, 0.0
        %vm756 = vcmp.gt.f32.partialorder %v734, 0.0
        %vm757 = vcmp.gt.f32.partialorder %v739, 0.0
        %vm758 = vcmp.gt.f32.partialorder %v744, 0.0
        %vm759 = vcmp.gt.f32.partialorder %v749, 0.0
        %v760 = vld [vmem:[%s6] sm:$0xff]
        %v761 = vld [vmem:[%s6 + $0x8] sm:$0xff]
        %v762 = vld [vmem:[%s6 + $0x10] sm:$0xff]
        %v763 = vld [vmem:[%s6 + $0x18] sm:$0xff]
        %v764 = vld [vmem:[%s6 + $0x20] sm:$0xff]
        %v765 = vld [vmem:[%s6 + $0x28] sm:$0xff]
        %v766 = vld [vmem:[%s6 + $0x30] sm:$0xff]
        %v767 = vld [vmem:[%s6 + $0x38] sm:$0xff]
        %v768 = vld [vmem:[%s6 + $0x40] sm:$0xff]
        %770 = vset.pattern.permute.xlu0 0
        %771 = vperm.xlu0 %770, %v760
        %v772 = vpop.permute.xlu0 %771
        %775 = vset.pattern.permute.xlu0 0
        %776 = vperm.xlu0 %775, %v761
        %v777 = vpop.permute.xlu0 %776
        %780 = vset.pattern.permute.xlu0 0
        %781 = vperm.xlu0 %780, %v762
        %v782 = vpop.permute.xlu0 %781
        %785 = vset.pattern.permute.xlu0 0
        %786 = vperm.xlu0 %785, %v763
        %v787 = vpop.permute.xlu0 %786
        %790 = vset.pattern.permute.xlu0 0
        %791 = vperm.xlu0 %790, %v764
        %v792 = vpop.permute.xlu0 %791
        %795 = vset.pattern.permute.xlu0 0
        %796 = vperm.xlu0 %795, %v765
        %v797 = vpop.permute.xlu0 %796
        %800 = vset.pattern.permute.xlu0 0
        %801 = vperm.xlu0 %800, %v766
        %v802 = vpop.permute.xlu0 %801
        %805 = vset.pattern.permute.xlu0 0
        %806 = vperm.xlu0 %805, %v767
        %v807 = vpop.permute.xlu0 %806
        %810 = vset.pattern.permute.xlu0 0
        %811 = vperm.xlu0 %810, %v768
        %v812 = vpop.permute.xlu0 %811
        %vm814 = vcmp.gt.f32.partialorder %v772, 0.0
        %vm815 = vcmp.gt.f32.partialorder %v777, 0.0
        %vm816 = vcmp.gt.f32.partialorder %v782, 0.0
        %vm817 = vcmp.gt.f32.partialorder %v787, 0.0
        %vm818 = vcmp.gt.f32.partialorder %v792, 0.0
        %vm819 = vcmp.gt.f32.partialorder %v797, 0.0
        %vm820 = vcmp.gt.f32.partialorder %v802, 0.0
        %vm821 = vcmp.gt.f32.partialorder %v807, 0.0
        %vm822 = vcmp.gt.f32.partialorder %v812, 0.0
        %v823 = vsub.f32 %v680, 0.5
        %v824 = vsub.f32 %v682, 0.5
        %v825 = vsub.f32 %v684, 0.5
        %v826 = vsub.f32 %v686, 0.5
        %v827 = vsub.f32 %v688, 0.5
        %v828 = vsub.f32 %v690, 0.5
        %v829 = vsub.f32 %v692, 0.5
        %v830 = vsub.f32 %v694, 0.5
        %v831 = vsub.f32 %v696, 0.5
        %v832 = vsel %vm814, %v823, %v600
        %v833 = vsel %vm815, %v824, %v605
        %v834 = vsel %vm816, %v825, %v610
        %v835 = vsel %vm817, %v826, %v615
        %v836 = vsel %vm818, %v827, %v620
        %v837 = vsel %vm819, %v828, %v625
        %v838 = vsel %vm820, %v829, %v630
        %v839 = vsel %vm821, %v830, %v635
        %v840 = vsel %vm822, %v831, %v640
        %v841 = vsel %vm751, %v680, %v832
        %v842 = vsel %vm752, %v682, %v833
        %v843 = vsel %vm753, %v684, %v834
        %v844 = vsel %vm754, %v686, %v835
        %v845 = vsel %vm755, %v688, %v836
        %v846 = vsel %vm756, %v690, %v837
        %v847 = vsel %vm757, %v692, %v838
        %v848 = vsel %vm758, %v694, %v839
        %v849 = vsel %vm759, %v696, %v840
        %850 = vst [vmem:[%s293] sm:$0xff] %v841
        %851 = vst [vmem:[%s293 + $0x8] sm:$0xff] %v842
        %852 = vst [vmem:[%s293 + $0x10] sm:$0xff] %v843
        %853 = vst [vmem:[%s293 + $0x18] sm:$0xff] %v844
        %854 = vst [vmem:[%s293 + $0x20] sm:$0xff] %v845
        %855 = vst [vmem:[%s293 + $0x28] sm:$0xff] %v846
        %856 = vst [vmem:[%s293 + $0x30] sm:$0xff] %v847
        %857 = vst [vmem:[%s293 + $0x38] sm:$0xff] %v848
        %858 = vst [vmem:[%s293 + $0x40] sm:$0xff] %v849
        %s859 = sand.u32 %s197, 1
        %s860 = scalar_lea.sflag [#allocation3], %s859
        %s861 = sand.u32 %s197, 1
        %s862 = smul.addr %s861, 72
        %s863 = scalar_lea.vmem [#allocation2], %s862
        // Predicated region
        $region49: #{tpu_custom_call.1} parent=47 // pred_check
          %p864 = pneg %p207
        $region50: #{tpu_custom_call.1} parent=47 // pred_check_branch
          %866 = sbr.rel (%p864) target = $region52
        $region51: #{tpu_custom_call.1} parent=47 // pred_region
          %s868 = ssub.s32 1152, 1152
          %869 = vsyncadd %s860, %s868
          %s870 = smul.addr %s25, 9
          %s871 = sadd.s32 %s26, %s870
          %s872 = smul.addr %s871, 128
          %s873 = scalar_lea.hbm %s7, %s872
          %s874 = sshll.u32 %s863, 4
          %s875 = int_to_ptr.vmem [resolvable:$true] %s874
          %880 = dma.vmem_to_hbm [thread:$0]  %s875, 1152, %s873, %s860, 128, 128, 8
        $region52: #{tpu_custom_call.1} parent=47 // pred_fallthru
          _
      $region48: #{tpu_custom_call.1} parent=5 // pred_fallthru
        _
      %p881 = scmp.le.s32.totalorder 2, %s16
      // Predicated region
      $region53: #{tpu_custom_call.1} parent=5 // pred_check
        %p882 = pneg %p881
      $region54: #{tpu_custom_call.1} parent=5 // pred_check_branch
        %884 = sbr.rel (%p882) target = $region56
      $region55: #{tpu_custom_call.1} parent=5 // pred_region
        %s885 = ssub.s32 %s16, 2
        // Predicated region
        $region57: #{tpu_custom_call.1} parent=55 // pred_check
          %p886 = pneg %p213
        $region58: #{tpu_custom_call.1} parent=55 // pred_check_branch
          %888 = sbr.rel (%p886) target = $region60
        $region59: #{tpu_custom_call.1} parent=55 // pred_region
          %s889 = sand.u32 %s198, 1
          %s890 = scalar_lea.sflag [#allocation3], %s889
          %s891 = sand.u32 %s198, 1
          %s892 = smul.addr %s891, 72
          %s893 = scalar_lea.vmem [#allocation2], %s892
          %894 = dma.done %s890, 1152
        $region60: #{tpu_custom_call.1} parent=55 // pred_fallthru
          _
      $region56: #{tpu_custom_call.1} parent=5 // pred_fallthru
        _
    $region6: #{tpu_custom_call.1} parent=1 // loop_footer
      %s20 = sadd.s32 1, %s16
    $region7: #{tpu_custom_call.1} parent=1 // loop_footer_branch
      %15 = sbr.rel target = $region3
    $region8: #{tpu_custom_call.1} parent=1 // loop_exit
      _
    %895 = vsyncpa [#allocation3], 1
    %s896 = scalar_lea.sflag [#allocation3], 1
    %897 = vsyncpa %s896, 1

</llo_original>
